<compile_context>
chip_gen: v6e
topology: v6e:2x2x1
jax: 0.10.0
libtpu: 0.0.40
codegen_flags: <defaults>
</compile_context>

<pallas_src>
import functools

import jax
import jax.numpy as jnp
from jax import lax
from jax.experimental import pallas as pl
from jax.experimental.pallas import tpu as pltpu

_LANE = 128


# ----------------------------------------------------------------------------
# Kernel
# ----------------------------------------------------------------------------
def _apply_activation(h, activation: str):
    if activation == "relu":
        return jnp.maximum(h, 0.0)
    if activation == "gelu":
        return jax.nn.gelu(h, approximate=False)   # exact erf, like torch nn.GELU
    if activation == "sigmoid":
        return jax.nn.sigmoid(h)
    if activation == "tanh":
        return jnp.tanh(h)
    raise ValueError(f"unsupported activation: {activation}")


def _fused_mlp_kernel(*refs, n_blocks: int, eps: float, activation: str,
                      compute_dtype):
    """Fused [Linear -> LayerNorm -> act]*n_blocks -> Linear for one row tile.

    refs = [x_ref,
            (w_ref, b_ref, gamma_ref, beta_ref) * n_blocks,
            w_out_ref, b_out_ref,
            o_ref]
    x_ref: (tb, D0); w_i: (D_{i-1}, D_i); b/gamma/beta_i: (1, D_i) f32;
    w_out: (D_last, Dout_pad); b_out: (1, Dout_pad) f32; o_ref: (tb, Dout_pad).
    """
    x_ref = refs[0]
    o_ref = refs[-1]

    h = x_ref[...]                                 # native dtype (bf16/f32)
    for i in range(n_blocks):
        w_ref, b_ref, g_ref, be_ref = refs[1 + 4 * i: 5 + 4 * i]

        # Linear on the MXU in native dtype, f32 accumulation + f32 bias.
        acc = jnp.dot(h, w_ref[...], preferred_element_type=jnp.float32)
        acc = acc + b_ref[...]

        # LayerNorm over the feature (lane) axis, f32 stats, one-pass variance.
        mean = jnp.mean(acc, axis=-1, keepdims=True)
        mean_sq = jnp.mean(acc * acc, axis=-1, keepdims=True)
        var = mean_sq - mean * mean
        inv = lax.rsqrt(var + eps)                 # EUP slot
        acc = (acc - mean) * (inv * g_ref[...]) + be_ref[...]   # gamma pre-fused

        # Activation; nn.Dropout is identity in eval / inference forward.
        # TODO(synk): training-mode dropout (pltpu.prng_* mask) not implemented.
        h = _apply_activation(acc, activation).astype(compute_dtype)

    # Final Linear (lane-padded output for dense stores).
    w_out_ref = refs[1 + 4 * n_blocks]
    b_out_ref = refs[2 + 4 * n_blocks]
    out = jnp.dot(h, w_out_ref[...], preferred_element_type=jnp.float32)
    out = out + b_out_ref[...]
    o_ref[...] = out.astype(o_ref.dtype)


# ----------------------------------------------------------------------------
# Tiling helpers
# ----------------------------------------------------------------------------
def _sublane_multiple(dtype) -> int:
    bits = jnp.dtype(dtype).itemsize * 8
    return max(8, 256 // bits)        # 8 for f32, 16 for bf16, 32 for int8/fp8


def _round_up(x: int, m: int) -> int:
    return ((x + m - 1) // m) * m


# ----------------------------------------------------------------------------
# Wrapper
# ----------------------------------------------------------------------------
def mlp_forward(x, block_params, out_w, out_b, *, activation: str = "relu",
                eps: float = 1e-5, max_rows: int = 4096):
    """Full MLP forward matching the PyTorch module (eval mode):
       x -> [Linear -> LayerNorm -> act -> Dropout(id)]* -> Linear.

    x: [B, D0]; block_params: list of (w [Din,Dout], b, gamma, beta);
    out_w: [D_last, output_dim]; out_b: [output_dim]."""
    batch, d_in = x.shape
    dtype = x.dtype
    itemsize = jnp.dtype(dtype).itemsize
    n_blocks = len(block_params)

    dims = [d_in] + [int(w.shape[1]) for (w, _, _, _) in block_params]
    d_out = int(out_w.shape[1])
    d_out_pad = _round_up(max(d_out, _LANE), _LANE)     # lane-dense final store

    # Zero-pad the final projection so the output store uses full 128 lanes.
    out_w_p = jnp.zeros((dims[-1], d_out_pad), dtype=dtype)
    out_w_p = out_w_p.at[:, :d_out].set(out_w.astype(dtype))
    out_b_p = jnp.zeros((1, d_out_pad), jnp.float32)
    out_b_p = out_b_p.at[0, :d_out].set(out_b.astype(jnp.float32))

    # ---- VMEM budgeting ------------------------------------------------------
    try:
        vmem_cap = int(pltpu.get_tpu_info().vmem_capacity_bytes)
    except Exception:
        vmem_cap = 64 * 1024 * 1024           # conservative (v7x per-TC VMEM)
    vmem_limit = int(min(100 * 1024 * 1024, int(vmem_cap * 0.75)))

    # Resident params (weights in native dtype, bias/gamma/beta in f32).
    param_bytes = sum(int(w.size) * itemsize + 3 * int(w.shape[1]) * 4
                      for (w, _, _, _) in block_params)
    param_bytes += int(out_w_p.size) * itemsize + d_out_pad * 4
    resident_bytes = 2 * param_bytes          # Pallas double-buffers blocks

    # Per-row bytes: double-buffered in/out tiles + f32 live intermediates.
    per_row = 2 * itemsize * (d_in + d_out_pad) + 4 * (d_in + sum(dims[1:]) + d_out_pad)
    budget = max(vmem_limit - resident_bytes - (4 << 20), 1 << 20)

    mult = _sublane_multiple(dtype)
    tb = min(batch, max_rows, max(mult, budget // max(per_row, 1)))
    if tb < batch:
        tb = max(mult, (tb // mult) * mult)   # sublane-aligned partial tiles
    tb = min(tb, batch)
    grid = (pl.cdiv(batch, tb),)

    # ---- Cost estimate -------------------------------------------------------
    flops = 0
    for i in range(n_blocks):
        flops += 2 * batch * dims[i] * dims[i + 1] + 10 * batch * dims[i + 1]
    flops += 2 * batch * dims[-1] * d_out_pad
    transcendentals = batch * n_blocks                     # rsqrt per row per LN
    if activation in ("gelu", "sigmoid", "tanh"):
        transcendentals += batch * sum(dims[1:])
    bytes_accessed = itemsize * batch * (d_in + d_out_pad) + param_bytes

    # ---- Build specs / args --------------------------------------------------
    in_specs = [pl.BlockSpec((tb, d_in), lambda i: (i, 0))]
    args = [x]
    for (w, b, gamma, beta) in block_params:
        di, do = int(w.shape[0]), int(w.shape[1])
        in_specs += [
            pl.BlockSpec((di, do), lambda i: (0, 0)),      # resident weight
            pl.BlockSpec((1, do), lambda i: (0, 0)),
            pl.BlockSpec((1, do), lambda i: (0, 0)),
            pl.BlockSpec((1, do), lambda i: (0, 0)),
        ]
        args += [
            w.astype(dtype),                               # native-dtype MXU path
            b.reshape(1, do).astype(jnp.float32),
            gamma.reshape(1, do).astype(jnp.float32),
            beta.reshape(1, do).astype(jnp.float32),
        ]
    in_specs += [
        pl.BlockSpec((dims[-1], d_out_pad), lambda i: (0, 0)),
        pl.BlockSpec((1, d_out_pad), lambda i: (0, 0)),
    ]
    args += [out_w_p, out_b_p]

    kernel = functools.partial(_fused_mlp_kernel, n_blocks=n_blocks, eps=eps,
                               activation=activation, compute_dtype=dtype)

    out_padded = pl.pallas_call(
        kernel,
        out_shape=jax.ShapeDtypeStruct((batch, d_out_pad), dtype),
        grid_spec=pltpu.PrefetchScalarGridSpec(
            num_scalar_prefetch=0,
            grid=grid,
            in_specs=in_specs,
            out_specs=pl.BlockSpec((tb, d_out_pad), lambda i: (i, 0)),
        ),
        compiler_params=pltpu.CompilerParams(
            dimension_semantics=("parallel",),
            vmem_limit_bytes=vmem_limit,
        ),
        cost_estimate=pl.CostEstimate(
            flops=int(flops),
            transcendentals=int(transcendentals),
            bytes_accessed=int(bytes_accessed),
        ),
    )(*args)

    return out_padded[:, :d_out]


# ----------------------------------------------------------------------------
# Pure-JAX reference
# ----------------------------------------------------------------------------
def _reference_mlp(x, block_params, out_w, out_b, *, activation="relu", eps=1e-5):
    h = x.astype(jnp.float32)
    for (w, b, gamma, beta) in block_params:
        h = h @ w.astype(jnp.float32) + b
        mean = jnp.mean(h, axis=-1, keepdims=True)
        var = jnp.mean((h - mean) ** 2, axis=-1, keepdims=True)
        h = (h - mean) / jnp.sqrt(var + eps) * gamma + beta
        if activation == "relu":
            h = jnp.maximum(h, 0.0)
        elif activation == "gelu":
            h = jax.nn.gelu(h, approximate=False)
        elif activation == "sigmoid":
            h = jax.nn.sigmoid(h)
        elif activation == "tanh":
            h = jnp.tanh(h)
    return h @ out_w.astype(jnp.float32) + out_b


# ----------------------------------------------------------------------------
# Demo / self-test
# ----------------------------------------------------------------------------
if __name__ == "__main__":
    key = jax.random.PRNGKey(0)

    batch = 64
    input_dim = 32
    hidden_dims = [64, 32]
    output_dim = 8
    activation = "relu"

    dims = [input_dim] + hidden_dims
    block_params = []
    for i in range(len(dims) - 1):
        d_in_i, d_out_i = dims[i], dims[i + 1]
        key, kw, kb, kg, kbe = jax.random.split(key, 5)
        bound = 1.0 / (d_in_i ** 0.5)                    # torch nn.Linear init
        w = jax.random.uniform(kw, (d_in_i, d_out_i), jnp.float32, -bound, bound)
        b = jax.random.uniform(kb, (d_out_i,), jnp.float32, -bound, bound)
        gamma = 1.0 + 0.1 * jax.random.normal(kg, (d_out_i,), jnp.float32)
        beta = 0.1 * jax.random.normal(kbe, (d_out_i,), jnp.float32)
        block_params.append((w, b, gamma, beta))

    key, kw, kb, kx = jax.random.split(key, 4)
    bound = 1.0 / (dims[-1] ** 0.5)
    out_w = jax.random.uniform(kw, (dims[-1], output_dim), jnp.float32, -bound, bound)
    out_b = jax.random.uniform(kb, (output_dim,), jnp.float32, -bound, bound)

    x = jax.random.normal(kx, (batch, input_dim), dtype=jnp.float32)

    # f32 path: exact parity with the PyTorch-equivalent reference.
    out = mlp_forward(x, block_params, out_w, out_b, activation=activation)
    out = jax.block_until_ready(out)
    ref = _reference_mlp(x, block_params, out_w, out_b, activation=activation)
    assert out.shape == (batch, output_dim)
    assert jnp.allclose(out, ref, atol=1e-4, rtol=1e-4), "mismatch vs reference"

    # bf16 path: native bf16 MXU matmuls with f32 accumulation (sanity only).
    x_bf = x.astype(jnp.bfloat16)
    bp_bf = [(w.astype(jnp.bfloat16), b, g, be) for (w, b, g, be) in block_params]
    out_bf = mlp_forward(x_bf, bp_bf, out_w.astype(jnp.bfloat16), out_b,
                         activation=activation)
    out_bf = jax.block_until_ready(out_bf)
    assert out_bf.shape == (batch, output_dim)
    assert bool(jnp.all(jnp.isfinite(out_bf.astype(jnp.float32))))

    print("KERNEL_OK")
</pallas_src>

<mosaic_0001>
module attributes {stable_mosaic.version = 11 : i64} {
  func.func @_fused_mlp_kernel(%arg0: i32, %arg1: memref<64x32xf32, #tpu.memory_space<vmem>>, %arg2: memref<32x64xf32, #tpu.memory_space<vmem>>, %arg3: memref<1x64xf32, #tpu.memory_space<vmem>>, %arg4: memref<1x64xf32, #tpu.memory_space<vmem>>, %arg5: memref<1x64xf32, #tpu.memory_space<vmem>>, %arg6: memref<64x32xf32, #tpu.memory_space<vmem>>, %arg7: memref<1x32xf32, #tpu.memory_space<vmem>>, %arg8: memref<1x32xf32, #tpu.memory_space<vmem>>, %arg9: memref<1x32xf32, #tpu.memory_space<vmem>>, %arg10: memref<32x128xf32, #tpu.memory_space<vmem>>, %arg11: memref<1x128xf32, #tpu.memory_space<vmem>>, %arg12: memref<64x128xf32, #tpu.memory_space<vmem>>) attributes {dimension_semantics = [#tpu.dimension_semantics<parallel>], iteration_bounds = array<i64: 1>, scalar_prefetch = 0 : i64, scratch_operands = 0 : i64, tpu.core_type = #tpu.core_type<tc>, window_params = [{transform_indices = @transform_0, window_bounds = array<i64: 64, 32>}, {pipeline_mode = #tpu.pipeline_mode<synchronous>, transform_indices = @transform_1, window_bounds = array<i64: 32, 64>}, {pipeline_mode = #tpu.pipeline_mode<synchronous>, transform_indices = @transform_2, window_bounds = array<i64: 1, 64>}, {pipeline_mode = #tpu.pipeline_mode<synchronous>, transform_indices = @transform_3, window_bounds = array<i64: 1, 64>}, {pipeline_mode = #tpu.pipeline_mode<synchronous>, transform_indices = @transform_4, window_bounds = array<i64: 1, 64>}, {pipeline_mode = #tpu.pipeline_mode<synchronous>, transform_indices = @transform_5, window_bounds = array<i64: 64, 32>}, {pipeline_mode = #tpu.pipeline_mode<synchronous>, transform_indices = @transform_6, window_bounds = array<i64: 1, 32>}, {pipeline_mode = #tpu.pipeline_mode<synchronous>, transform_indices = @transform_7, window_bounds = array<i64: 1, 32>}, {pipeline_mode = #tpu.pipeline_mode<synchronous>, transform_indices = @transform_8, window_bounds = array<i64: 1, 32>}, {pipeline_mode = #tpu.pipeline_mode<synchronous>, transform_indices = @transform_9, window_bounds = array<i64: 32, 128>}, {pipeline_mode = #tpu.pipeline_mode<synchronous>, transform_indices = @transform_10, window_bounds = array<i64: 1, 128>}, {transform_indices = @transform_11, window_bounds = array<i64: 64, 128>}]} {
    %c0 = arith.constant 0 : index
    %c0_0 = arith.constant 0 : index
    %0 = vector.load %arg1[%c0, %c0_0] : memref<64x32xf32, #tpu.memory_space<vmem>>, vector<64x32xf32>
    %c0_1 = arith.constant 0 : index
    %c0_2 = arith.constant 0 : index
    %1 = vector.load %arg2[%c0_1, %c0_2] : memref<32x64xf32, #tpu.memory_space<vmem>>, vector<32x64xf32>
    %cst = arith.constant dense<0.000000e+00> : vector<64x64xf32>
    %2 = tpu.matmul %0, %1, %cst {dimension_numbers = #tpu.dot_dimension_numbers<[1], [0], [0], [1], [0, 0, 1, 1], [], []>} : vector<64x32xf32>, vector<32x64xf32>, vector<64x64xf32> -> vector<64x64xf32>
    %c0_3 = arith.constant 0 : index
    %c0_4 = arith.constant 0 : index
    %3 = vector.load %arg3[%c0_3, %c0_4] : memref<1x64xf32, #tpu.memory_space<vmem>>, vector<1x64xf32>
    %4 = vector.broadcast %3 : vector<1x64xf32> to vector<64x64xf32>
    %5 = arith.addf %2, %4 : vector<64x64xf32>
    %cst_5 = arith.constant dense<0.000000e+00> : vector<64xf32>
    %6 = vector.multi_reduction <add>, %5, %cst_5 [1] : vector<64x64xf32> to vector<64xf32>
    %7 = vector.shape_cast %6 : vector<64xf32> to vector<64x1xf32>
    %cst_6 = arith.constant 6.400000e+01 : f32
    %8 = vector.broadcast %cst_6 : f32 to vector<64x1xf32>
    %9 = arith.divf %7, %8 : vector<64x1xf32>
    %10 = arith.mulf %5, %5 : vector<64x64xf32>
    %cst_7 = arith.constant dense<0.000000e+00> : vector<64xf32>
    %11 = vector.multi_reduction <add>, %10, %cst_7 [1] : vector<64x64xf32> to vector<64xf32>
    %12 = vector.shape_cast %11 : vector<64xf32> to vector<64x1xf32>
    %cst_8 = arith.constant 6.400000e+01 : f32
    %13 = vector.broadcast %cst_8 : f32 to vector<64x1xf32>
    %14 = arith.divf %12, %13 : vector<64x1xf32>
    %15 = arith.mulf %9, %9 : vector<64x1xf32>
    %16 = arith.subf %14, %15 : vector<64x1xf32>
    %cst_9 = arith.constant 9.99999974E-6 : f32
    %17 = vector.broadcast %cst_9 : f32 to vector<64x1xf32>
    %18 = arith.addf %16, %17 : vector<64x1xf32>
    %19 = math.rsqrt %18 : vector<64x1xf32>
    %20 = vector.broadcast %9 : vector<64x1xf32> to vector<64x64xf32>
    %21 = arith.subf %5, %20 : vector<64x64xf32>
    %c0_10 = arith.constant 0 : index
    %c0_11 = arith.constant 0 : index
    %22 = vector.load %arg4[%c0_10, %c0_11] : memref<1x64xf32, #tpu.memory_space<vmem>>, vector<1x64xf32>
    %23 = vector.broadcast %19 : vector<64x1xf32> to vector<64x64xf32>
    %24 = vector.broadcast %22 : vector<1x64xf32> to vector<64x64xf32>
    %25 = arith.mulf %23, %24 : vector<64x64xf32>
    %26 = arith.mulf %21, %25 : vector<64x64xf32>
    %c0_12 = arith.constant 0 : index
    %c0_13 = arith.constant 0 : index
    %27 = vector.load %arg5[%c0_12, %c0_13] : memref<1x64xf32, #tpu.memory_space<vmem>>, vector<1x64xf32>
    %28 = vector.broadcast %27 : vector<1x64xf32> to vector<64x64xf32>
    %29 = arith.addf %26, %28 : vector<64x64xf32>
    %cst_14 = arith.constant 0.000000e+00 : f32
    %30 = vector.broadcast %cst_14 : f32 to vector<64x64xf32>
    %31 = arith.maximumf %29, %30 : vector<64x64xf32>
    %c0_15 = arith.constant 0 : index
    %c0_16 = arith.constant 0 : index
    %32 = vector.load %arg6[%c0_15, %c0_16] : memref<64x32xf32, #tpu.memory_space<vmem>>, vector<64x32xf32>
    %cst_17 = arith.constant dense<0.000000e+00> : vector<64x32xf32>
    %33 = tpu.matmul %31, %32, %cst_17 {dimension_numbers = #tpu.dot_dimension_numbers<[1], [0], [0], [1], [0, 0, 1, 1], [], []>} : vector<64x64xf32>, vector<64x32xf32>, vector<64x32xf32> -> vector<64x32xf32>
    %c0_18 = arith.constant 0 : index
    %c0_19 = arith.constant 0 : index
    %34 = vector.load %arg7[%c0_18, %c0_19] : memref<1x32xf32, #tpu.memory_space<vmem>>, vector<1x32xf32>
    %35 = vector.broadcast %34 : vector<1x32xf32> to vector<64x32xf32>
    %36 = arith.addf %33, %35 : vector<64x32xf32>
    %cst_20 = arith.constant dense<0.000000e+00> : vector<64xf32>
    %37 = vector.multi_reduction <add>, %36, %cst_20 [1] : vector<64x32xf32> to vector<64xf32>
    %38 = vector.shape_cast %37 : vector<64xf32> to vector<64x1xf32>
    %cst_21 = arith.constant 3.200000e+01 : f32
    %39 = vector.broadcast %cst_21 : f32 to vector<64x1xf32>
    %40 = arith.divf %38, %39 : vector<64x1xf32>
    %41 = arith.mulf %36, %36 : vector<64x32xf32>
    %cst_22 = arith.constant dense<0.000000e+00> : vector<64xf32>
    %42 = vector.multi_reduction <add>, %41, %cst_22 [1] : vector<64x32xf32> to vector<64xf32>
    %43 = vector.shape_cast %42 : vector<64xf32> to vector<64x1xf32>
    %cst_23 = arith.constant 3.200000e+01 : f32
    %44 = vector.broadcast %cst_23 : f32 to vector<64x1xf32>
    %45 = arith.divf %43, %44 : vector<64x1xf32>
    %46 = arith.mulf %40, %40 : vector<64x1xf32>
    %47 = arith.subf %45, %46 : vector<64x1xf32>
    %cst_24 = arith.constant 9.99999974E-6 : f32
    %48 = vector.broadcast %cst_24 : f32 to vector<64x1xf32>
    %49 = arith.addf %47, %48 : vector<64x1xf32>
    %50 = math.rsqrt %49 : vector<64x1xf32>
    %51 = vector.broadcast %40 : vector<64x1xf32> to vector<64x32xf32>
    %52 = arith.subf %36, %51 : vector<64x32xf32>
    %c0_25 = arith.constant 0 : index
    %c0_26 = arith.constant 0 : index
    %53 = vector.load %arg8[%c0_25, %c0_26] : memref<1x32xf32, #tpu.memory_space<vmem>>, vector<1x32xf32>
    %54 = vector.broadcast %50 : vector<64x1xf32> to vector<64x32xf32>
    %55 = vector.broadcast %53 : vector<1x32xf32> to vector<64x32xf32>
    %56 = arith.mulf %54, %55 : vector<64x32xf32>
    %57 = arith.mulf %52, %56 : vector<64x32xf32>
    %c0_27 = arith.constant 0 : index
    %c0_28 = arith.constant 0 : index
    %58 = vector.load %arg9[%c0_27, %c0_28] : memref<1x32xf32, #tpu.memory_space<vmem>>, vector<1x32xf32>
    %59 = vector.broadcast %58 : vector<1x32xf32> to vector<64x32xf32>
    %60 = arith.addf %57, %59 : vector<64x32xf32>
    %cst_29 = arith.constant 0.000000e+00 : f32
    %61 = vector.broadcast %cst_29 : f32 to vector<64x32xf32>
    %62 = arith.maximumf %60, %61 : vector<64x32xf32>
    %c0_30 = arith.constant 0 : index
    %c0_31 = arith.constant 0 : index
    %63 = vector.load %arg10[%c0_30, %c0_31] : memref<32x128xf32, #tpu.memory_space<vmem>>, vector<32x128xf32>
    %cst_32 = arith.constant dense<0.000000e+00> : vector<64x128xf32>
    %64 = tpu.matmul %62, %63, %cst_32 {dimension_numbers = #tpu.dot_dimension_numbers<[1], [0], [0], [1], [0, 0, 1, 1], [], []>} : vector<64x32xf32>, vector<32x128xf32>, vector<64x128xf32> -> vector<64x128xf32>
    %c0_33 = arith.constant 0 : index
    %c0_34 = arith.constant 0 : index
    %65 = vector.load %arg11[%c0_33, %c0_34] : memref<1x128xf32, #tpu.memory_space<vmem>>, vector<1x128xf32>
    %66 = vector.broadcast %65 : vector<1x128xf32> to vector<64x128xf32>
    %67 = arith.addf %64, %66 : vector<64x128xf32>
    %c0_35 = arith.constant 0 : index
    %c0_36 = arith.constant 0 : index
    %68 = vector.load %arg12[%c0_35, %c0_36] : memref<64x128xf32, #tpu.memory_space<vmem>>, vector<64x128xf32>
    tpu.vector_store %arg12[%c0_35, %c0_36], %67 {strides = array<i32>} : memref<64x128xf32, #tpu.memory_space<vmem>>, vector<64x128xf32>,
    return
  }
  func.func @transform_0(%arg0: i32) -> (i32, i32) {
    %c0_i32 = arith.constant 0 : i32
    %c0_i32_0 = arith.constant 0 : i32
    return %arg0, %c0_i32 : i32, i32
  }
  func.func @transform_1(%arg0: i32) -> (i32, i32) {
    %c0_i32 = arith.constant 0 : i32
    %c0_i32_0 = arith.constant 0 : i32
    %c0_i32_1 = arith.constant 0 : i32
    return %c0_i32, %c0_i32_0 : i32, i32
  }
  func.func @transform_2(%arg0: i32) -> (i32, i32) {
    %c0_i32 = arith.constant 0 : i32
    %c0_i32_0 = arith.constant 0 : i32
    %c0_i32_1 = arith.constant 0 : i32
    return %c0_i32, %c0_i32_0 : i32, i32
  }
  func.func @transform_3(%arg0: i32) -> (i32, i32) {
    %c0_i32 = arith.constant 0 : i32
    %c0_i32_0 = arith.constant 0 : i32
    %c0_i32_1 = arith.constant 0 : i32
    return %c0_i32, %c0_i32_0 : i32, i32
  }
  func.func @transform_4(%arg0: i32) -> (i32, i32) {
    %c0_i32 = arith.constant 0 : i32
    %c0_i32_0 = arith.constant 0 : i32
    %c0_i32_1 = arith.constant 0 : i32
    return %c0_i32, %c0_i32_0 : i32, i32
  }
  func.func @transform_5(%arg0: i32) -> (i32, i32) {
    %c0_i32 = arith.constant 0 : i32
    %c0_i32_0 = arith.constant 0 : i32
    %c0_i32_1 = arith.constant 0 : i32
    return %c0_i32, %c0_i32_0 : i32, i32
  }
  func.func @transform_6(%arg0: i32) -> (i32, i32) {
    %c0_i32 = arith.constant 0 : i32
    %c0_i32_0 = arith.constant 0 : i32
    %c0_i32_1 = arith.constant 0 : i32
    return %c0_i32, %c0_i32_0 : i32, i32
  }
  func.func @transform_7(%arg0: i32) -> (i32, i32) {
    %c0_i32 = arith.constant 0 : i32
    %c0_i32_0 = arith.constant 0 : i32
    %c0_i32_1 = arith.constant 0 : i32
    return %c0_i32, %c0_i32_0 : i32, i32
  }
  func.func @transform_8(%arg0: i32) -> (i32, i32) {
    %c0_i32 = arith.constant 0 : i32
    %c0_i32_0 = arith.constant 0 : i32
    %c0_i32_1 = arith.constant 0 : i32
    return %c0_i32, %c0_i32_0 : i32, i32
  }
  func.func @transform_9(%arg0: i32) -> (i32, i32) {
    %c0_i32 = arith.constant 0 : i32
    %c0_i32_0 = arith.constant 0 : i32
    %c0_i32_1 = arith.constant 0 : i32
    return %c0_i32, %c0_i32_0 : i32, i32
  }
  func.func @transform_10(%arg0: i32) -> (i32, i32) {
    %c0_i32 = arith.constant 0 : i32
    %c0_i32_0 = arith.constant 0 : i32
    %c0_i32_1 = arith.constant 0 : i32
    return %c0_i32, %c0_i32_0 : i32, i32
  }
  func.func @transform_11(%arg0: i32) -> (i32, i32) {
    %c0_i32 = arith.constant 0 : i32
    %c0_i32_0 = arith.constant 0 : i32
    return %arg0, %c0_i32 : i32, i32
  }
}

</mosaic_0001>

<llo_original>
// kernel: tpu_custom_call.1
$region0: #{tpu_custom_call.1}
  #allocation0 [shape = 'u32[]', space=smem, size = 0x4, offset = 0x4, fixed_abs, tag = 'smem constant byte address 0x4 - core index']
  #allocation1 [shape = 'u32[144,128]{1,0:T(1,128)}', space=vmem, size = 0x12000, scoped, tag = 'internal scratch']
  %s0 = inlined_call_operand.vmem [shape: f32[64,32], index: 0, kind: input, shape index: {}]
  %s1 = inlined_call_operand.vmem [shape: f32[32,64], index: 1, kind: input, shape index: {}]
  %s2 = inlined_call_operand.vmem [shape: f32[1,64], index: 2, kind: input, shape index: {}]
  %s3 = inlined_call_operand.vmem [shape: f32[1,64], index: 3, kind: input, shape index: {}]
  %s4 = inlined_call_operand.vmem [shape: f32[1,64], index: 4, kind: input, shape index: {}]
  %s5 = inlined_call_operand.vmem [shape: f32[64,32], index: 5, kind: input, shape index: {}]
  %s6 = inlined_call_operand.vmem [shape: f32[1,32], index: 6, kind: input, shape index: {}]
  %s7 = inlined_call_operand.vmem [shape: f32[1,32], index: 7, kind: input, shape index: {}]
  %s8 = inlined_call_operand.vmem [shape: f32[1,32], index: 8, kind: input, shape index: {}]
  %s9 = inlined_call_operand.vmem [shape: f32[32,128], index: 9, kind: input, shape index: {}]
  %s10 = inlined_call_operand.vmem [shape: f32[1,128], index: 10, kind: input, shape index: {}]
  %s11 = inlined_call_operand.hbm [shape: f32[64,128], index: 11, kind: output, shape index: {}]
  %s12 = sld [smem:[#allocation0]]
  $region54: #{tpu_custom_call.1} parent=0
    _
  %s14 = ssub.s32 1, %s12
  %s15 = scalar_select 0, %s14, %s12
  $region1: #{tpu_custom_call.1} parent=0
    #allocation2 [shape = 'u8[32768]{0}', space=vmem, size = 0x8000, scoped, tag = 'output window, operand 0, single buffered']
    #allocation3 [shape = 's32[1]{0}', space=sflag, size = 0x4, scoped, tag = 'scoped memory for tpu_custom_call.1']
    %16 = vsyncpa [#allocation3], 0
    // Predicated region
    $region2: #{tpu_custom_call.1} parent=1 // pred_check
      _
    $region3: #{tpu_custom_call.1} parent=1 // pred_check_branch
      %18 = sbr.rel (0) target = $region5
    $region4: #{tpu_custom_call.1} parent=1 // pred_region
      _
    $region5: #{tpu_custom_call.1} parent=1 // pred_fallthru
      _
    // Predicated region
    $region6: #{tpu_custom_call.1} parent=1 // pred_check
      _
    $region7: #{tpu_custom_call.1} parent=1 // pred_check_branch
      %20 = sbr.rel (0) target = $region9
    $region8: #{tpu_custom_call.1} parent=1 // pred_region
      _
    $region9: #{tpu_custom_call.1} parent=1 // pred_fallthru
      _
    // Predicated region
    $region10: #{tpu_custom_call.1} parent=1 // pred_check
      _
    $region11: #{tpu_custom_call.1} parent=1 // pred_check_branch
      %22 = sbr.rel (0) target = $region13
    $region12: #{tpu_custom_call.1} parent=1 // pred_region
      _
    $region13: #{tpu_custom_call.1} parent=1 // pred_fallthru
      _
    // Predicated region
    $region14: #{tpu_custom_call.1} parent=1 // pred_check
      _
    $region15: #{tpu_custom_call.1} parent=1 // pred_check_branch
      %24 = sbr.rel (0) target = $region17
    $region16: #{tpu_custom_call.1} parent=1 // pred_region
      _
    $region17: #{tpu_custom_call.1} parent=1 // pred_fallthru
      _
    // Predicated region
    $region18: #{tpu_custom_call.1} parent=1 // pred_check
      _
    $region19: #{tpu_custom_call.1} parent=1 // pred_check_branch
      %26 = sbr.rel (0) target = $region21
    $region20: #{tpu_custom_call.1} parent=1 // pred_region
      _
    $region21: #{tpu_custom_call.1} parent=1 // pred_fallthru
      _
    // Predicated region
    $region22: #{tpu_custom_call.1} parent=1 // pred_check
      _
    $region23: #{tpu_custom_call.1} parent=1 // pred_check_branch
      %28 = sbr.rel (0) target = $region25
    $region24: #{tpu_custom_call.1} parent=1 // pred_region
      _
    $region25: #{tpu_custom_call.1} parent=1 // pred_fallthru
      _
    // Predicated region
    $region26: #{tpu_custom_call.1} parent=1 // pred_check
      _
    $region27: #{tpu_custom_call.1} parent=1 // pred_check_branch
      %30 = sbr.rel (0) target = $region29
    $region28: #{tpu_custom_call.1} parent=1 // pred_region
      _
    $region29: #{tpu_custom_call.1} parent=1 // pred_fallthru
      _
    // Predicated region
    $region30: #{tpu_custom_call.1} parent=1 // pred_check
      _
    $region31: #{tpu_custom_call.1} parent=1 // pred_check_branch
      %32 = sbr.rel (0) target = $region33
    $region32: #{tpu_custom_call.1} parent=1 // pred_region
      _
    $region33: #{tpu_custom_call.1} parent=1 // pred_fallthru
      _
    // Predicated region
    $region34: #{tpu_custom_call.1} parent=1 // pred_check
      _
    $region35: #{tpu_custom_call.1} parent=1 // pred_check_branch
      %34 = sbr.rel (0) target = $region37
    $region36: #{tpu_custom_call.1} parent=1 // pred_region
      _
    $region37: #{tpu_custom_call.1} parent=1 // pred_fallthru
      _
    // Predicated region
    $region38: #{tpu_custom_call.1} parent=1 // pred_check
      _
    $region39: #{tpu_custom_call.1} parent=1 // pred_check_branch
      %36 = sbr.rel (0) target = $region41
    $region40: #{tpu_custom_call.1} parent=1 // pred_region
      _
    $region41: #{tpu_custom_call.1} parent=1 // pred_fallthru
      _
    // Predicated region
    $region42: #{tpu_custom_call.1} parent=1 // pred_check
      _
    $region43: #{tpu_custom_call.1} parent=1 // pred_check_branch
      %38 = sbr.rel (0) target = $region45
    $region44: #{tpu_custom_call.1} parent=1 // pred_region
      _
    $region45: #{tpu_custom_call.1} parent=1 // pred_fallthru
      _
    %v39 = vld [vmem:[%s0] sm:$0xff]
    %v40 = vld [vmem:[%s0 + $0x8] sm:$0xff]
    %v41 = vld [vmem:[%s0 + $0x10] sm:$0xff]
    %v42 = vld [vmem:[%s0 + $0x18] sm:$0xff]
    %v43 = vld [vmem:[%s0 + $0x20] sm:$0xff]
    %v44 = vld [vmem:[%s0 + $0x28] sm:$0xff]
    %v45 = vld [vmem:[%s0 + $0x30] sm:$0xff]
    %v46 = vld [vmem:[%s0 + $0x38] sm:$0xff]
    %v47 = vld [vmem:[%s1] sm:$0xff]
    %v48 = vld [vmem:[%s1 + $0x8] sm:$0xff]
    %v49 = vld [vmem:[%s1 + $0x10] sm:$0xff]
    %v50 = vld [vmem:[%s1 + $0x18] sm:$0xff]
    %v51 = vld [vmem:[%s2] sm:$0x1]
    %v53 = vlaneseq
    %v54 = vshrl.u32 %v53, 7
    %v55 = vsub.s32 0, %v54
    %v56 = vrot.slane %v51, %v55
    %vm58 = vcmask 261120
    %v60 = vsel %vm58, %v39, 0
    %v63 = vsel %vm58, %v40, 0
    %v66 = vsel %vm58, %v41, 0
    %v69 = vsel %vm58, %v42, 0
    %v72 = vsel %vm58, %v43, 0
    %v75 = vsel %vm58, %v44, 0
    %v78 = vsel %vm58, %v45, 0
    %v81 = vsel %vm58, %v46, 0
    %83 = vmatprep.subr.mxu0 0.0
    %84 = vmatpush1.msra.mxu0 0.0
    %85 = vmatprep.subr.mxu0 0.0
    %86 = vmatpush1.msra.mxu0 0.0
    %87 = vmatprep.subr.mxu0 0.0
    %88 = vmatpush1.msra.mxu0 0.0
    %89 = vmatprep.subr.mxu0 0.0
    %90 = vmatpush1.msra.mxu0 0.0
    %91 = vmatprep.subr.mxu0 0.0
    %92 = vmatpush1.msra.mxu0 0.0
    %93 = vmatprep.subr.mxu0 0.0
    %94 = vmatpush1.msra.mxu0 0.0
    %95 = vmatprep.subr.mxu0 0.0
    %96 = vmatpush1.msra.mxu0 0.0
    %97 = vmatprep.subr.mxu0 0.0
    %98 = vmatpush1.msra.mxu0 0.0
    %99 = vmatprep.subr.mxu0 0.0
    %100 = vmatpush1.msra.mxu0 0.0
    %101 = vmatprep.subr.mxu0 0.0
    %102 = vmatpush1.msra.mxu0 0.0
    %103 = vmatprep.subr.mxu0 0.0
    %104 = vmatpush1.msra.mxu0 0.0
    %105 = vmatprep.subr.mxu0 0.0
    %106 = vmatpush1.msra.mxu0 0.0
    %107 = vmatprep.subr.mxu0 0.0
    %108 = vmatpush1.msra.mxu0 %v50
    %109 = vmatprep.subr.mxu0 0.0
    %110 = vmatpush1.msra.mxu0 %v49
    %111 = vmatprep.subr.mxu0 0.0
    %112 = vmatpush1.msra.mxu0 %v48
    %113 = vmatprep.subr.mxu0 0.0
    %114 = vmatpush1.msra.mxu0 %v47
    %115 = vmatprep.subr.mxu0 0.0
    %116 = vmatpush2.msra.mxu0 0.0
    %117 = vmatprep.subr.mxu0 0.0
    %118 = vmatpush2.msra.mxu0 0.0
    %119 = vmatprep.subr.mxu0 0.0
    %120 = vmatpush2.msra.mxu0 0.0
    %121 = vmatprep.subr.mxu0 0.0
    %122 = vmatpush2.msra.mxu0 0.0
    %123 = vmatprep.subr.mxu0 0.0
    %124 = vmatpush2.msra.mxu0 0.0
    %125 = vmatprep.subr.mxu0 0.0
    %126 = vmatpush2.msra.mxu0 0.0
    %127 = vmatprep.subr.mxu0 0.0
    %128 = vmatpush2.msra.mxu0 0.0
    %129 = vmatprep.subr.mxu0 0.0
    %130 = vmatpush2.msra.mxu0 0.0
    %131 = vmatprep.subr.mxu0 0.0
    %132 = vmatpush2.msra.mxu0 0.0
    %133 = vmatprep.subr.mxu0 0.0
    %134 = vmatpush2.msra.mxu0 0.0
    %135 = vmatprep.subr.mxu0 0.0
    %136 = vmatpush2.msra.mxu0 0.0
    %137 = vmatprep.subr.mxu0 0.0
    %138 = vmatpush2.msra.mxu0 0.0
    %139 = vmatprep.subr.mxu0 0.0
    %140 = vmatpush2.msra.mxu0 0.0
    %141 = vmatprep.subr.mxu0 0.0
    %142 = vmatpush2.msra.mxu0 0.0
    %143 = vmatprep.subr.mxu0 0.0
    %144 = vmatpush2.msra.mxu0 0.0
    %145 = vmatprep.subr.mxu0 0.0
    %146 = vmatpush2.msra.mxu0 0.0
    %147 = vmatprep.mubr.f32.mxu0 0.0
    %148 = vmatmul.mubr.f32.gmra.mxu0 %v60
    %v149 = vpop.f32.mrf.mxu0
    %v150 = vadd.f32 %v56, %v149
    %v151 = vpop.f32.mrf.mxu0
    %152 = vmatprep.mubr.f32.mxu0 0.0
    %153 = vmatmul.mubr.f32.gmra.mxu0 %v63
    %v154 = vpop.f32.mrf.mxu0
    %v155 = vadd.f32 %v56, %v154
    %v156 = vpop.f32.mrf.mxu0
    %157 = vmatprep.mubr.f32.mxu0 0.0
    %158 = vmatmul.mubr.f32.gmra.mxu0 %v66
    %v159 = vpop.f32.mrf.mxu0
    %v160 = vadd.f32 %v56, %v159
    %v161 = vpop.f32.mrf.mxu0
    %162 = vmatprep.mubr.f32.mxu0 0.0
    %163 = vmatmul.mubr.f32.gmra.mxu0 %v69
    %v164 = vpop.f32.mrf.mxu0
    %v165 = vadd.f32 %v56, %v164
    %v166 = vpop.f32.mrf.mxu0
    %167 = vmatprep.mubr.f32.mxu0 0.0
    %168 = vmatmul.mubr.f32.gmra.mxu0 %v72
    %v169 = vpop.f32.mrf.mxu0
    %v170 = vadd.f32 %v56, %v169
    %v171 = vpop.f32.mrf.mxu0
    %172 = vmatprep.mubr.f32.mxu0 0.0
    %173 = vmatmul.mubr.f32.gmra.mxu0 %v75
    %v174 = vpop.f32.mrf.mxu0
    %v175 = vadd.f32 %v56, %v174
    %v176 = vpop.f32.mrf.mxu0
    %177 = vmatprep.mubr.f32.mxu0 0.0
    %178 = vmatmul.mubr.f32.gmra.mxu0 %v78
    %v179 = vpop.f32.mrf.mxu0
    %v180 = vadd.f32 %v56, %v179
    %v181 = vpop.f32.mrf.mxu0
    %182 = vmatprep.mubr.f32.mxu0 0.0
    %183 = vmatmul.mubr.f32.gmra.mxu0 %v81
    %v184 = vpop.f32.mrf.mxu0
    %v185 = vadd.f32 %v56, %v184
    %v186 = vpop.f32.mrf.mxu0
    %187 = vdwg.mxu0
    %vm188 = vcmask 523264
    %v189 = vsel %vm188, %v150, 0.0
    %190 = vadd.xlane.f32.xlu0 %v189
    %v191 = vpop.xlane.xlu0 %190
    %v192 = vsel %vm188, %v155, 0.0
    %193 = vadd.xlane.f32.xlu0 %v192
    %v194 = vpop.xlane.xlu0 %193
    %v195 = vsel %vm188, %v160, 0.0
    %196 = vadd.xlane.f32.xlu0 %v195
    %v197 = vpop.xlane.xlu0 %196
    %v198 = vsel %vm188, %v165, 0.0
    %199 = vadd.xlane.f32.xlu0 %v198
    %v200 = vpop.xlane.xlu0 %199
    %v201 = vsel %vm188, %v170, 0.0
    %202 = vadd.xlane.f32.xlu0 %v201
    %v203 = vpop.xlane.xlu0 %202
    %v204 = vsel %vm188, %v175, 0.0
    %205 = vadd.xlane.f32.xlu0 %v204
    %v206 = vpop.xlane.xlu0 %205
    %v207 = vsel %vm188, %v180, 0.0
    %208 = vadd.xlane.f32.xlu0 %v207
    %v209 = vpop.xlane.xlu0 %208
    %v210 = vsel %vm188, %v185, 0.0
    %211 = vadd.xlane.f32.xlu0 %v210
    %v212 = vpop.xlane.xlu0 %211
    %v213 = vrcp.pop 64.0
    %v214 = vmul.f32 %v191, %v213
    %v215 = vmul.f32 %v194, %v213
    %v216 = vmul.f32 %v197, %v213
    %v217 = vmul.f32 %v200, %v213
    %v218 = vmul.f32 %v203, %v213
    %v219 = vmul.f32 %v206, %v213
    %v220 = vmul.f32 %v209, %v213
    %v221 = vmul.f32 %v212, %v213
    %v222 = vmul.f32 %v150, %v150
    %v223 = vmul.f32 %v155, %v155
    %v224 = vmul.f32 %v160, %v160
    %v225 = vmul.f32 %v165, %v165
    %v226 = vmul.f32 %v170, %v170
    %v227 = vmul.f32 %v175, %v175
    %v228 = vmul.f32 %v180, %v180
    %v229 = vmul.f32 %v185, %v185
    %v230 = vsel %vm188, %v222, 0.0
    %231 = vadd.xlane.f32.xlu0 %v230
    %v232 = vpop.xlane.xlu0 %231
    %v233 = vsel %vm188, %v223, 0.0
    %234 = vadd.xlane.f32.xlu0 %v233
    %v235 = vpop.xlane.xlu0 %234
    %v236 = vsel %vm188, %v224, 0.0
    %237 = vadd.xlane.f32.xlu0 %v236
    %v238 = vpop.xlane.xlu0 %237
    %v239 = vsel %vm188, %v225, 0.0
    %240 = vadd.xlane.f32.xlu0 %v239
    %v241 = vpop.xlane.xlu0 %240
    %v242 = vsel %vm188, %v226, 0.0
    %243 = vadd.xlane.f32.xlu0 %v242
    %v244 = vpop.xlane.xlu0 %243
    %v245 = vsel %vm188, %v227, 0.0
    %246 = vadd.xlane.f32.xlu0 %v245
    %v247 = vpop.xlane.xlu0 %246
    %v248 = vsel %vm188, %v228, 0.0
    %249 = vadd.xlane.f32.xlu0 %v248
    %v250 = vpop.xlane.xlu0 %249
    %v251 = vsel %vm188, %v229, 0.0
    %252 = vadd.xlane.f32.xlu0 %v251
    %v253 = vpop.xlane.xlu0 %252
    %v254 = vmul.f32 %v232, %v213
    %v255 = vmul.f32 %v235, %v213
    %v256 = vmul.f32 %v238, %v213
    %v257 = vmul.f32 %v241, %v213
    %v258 = vmul.f32 %v244, %v213
    %v259 = vmul.f32 %v247, %v213
    %v260 = vmul.f32 %v250, %v213
    %v261 = vmul.f32 %v253, %v213
    %v262 = vmul.f32 %v214, %v214
    %v263 = vmul.f32 %v215, %v215
    %v264 = vmul.f32 %v216, %v216
    %v265 = vmul.f32 %v217, %v217
    %v266 = vmul.f32 %v218, %v218
    %v267 = vmul.f32 %v219, %v219
    %v268 = vmul.f32 %v220, %v220
    %v269 = vmul.f32 %v221, %v221
    %v270 = vsub.f32 %v254, %v262
    %v271 = vsub.f32 %v255, %v263
    %v272 = vsub.f32 %v256, %v264
    %v273 = vsub.f32 %v257, %v265
    %v274 = vsub.f32 %v258, %v266
    %v275 = vsub.f32 %v259, %v267
    %v276 = vsub.f32 %v260, %v268
    %v277 = vsub.f32 %v261, %v269
    %v278 = vadd.f32 %v270, 1e-05
    %v279 = vadd.f32 %v271, 1e-05
    %v280 = vadd.f32 %v272, 1e-05
    %v281 = vadd.f32 %v273, 1e-05
    %v282 = vadd.f32 %v274, 1e-05
    %v283 = vadd.f32 %v275, 1e-05
    %v284 = vadd.f32 %v276, 1e-05
    %v285 = vadd.f32 %v277, 1e-05
    %v286 = vrsqrt.pop %v278
    %v287 = vrsqrt.pop %v279
    %v288 = vrsqrt.pop %v280
    %v289 = vrsqrt.pop %v281
    %v290 = vrsqrt.pop %v282
    %v291 = vrsqrt.pop %v283
    %v292 = vrsqrt.pop %v284
    %v293 = vrsqrt.pop %v285
    %v294 = vsub.f32 %v150, %v214
    %v295 = vsub.f32 %v155, %v215
    %v296 = vsub.f32 %v160, %v216
    %v297 = vsub.f32 %v165, %v217
    %v298 = vsub.f32 %v170, %v218
    %v299 = vsub.f32 %v175, %v219
    %v300 = vsub.f32 %v180, %v220
    %v301 = vsub.f32 %v185, %v221
    %v302 = vld [vmem:[%s3] sm:$0x1]
    %v304 = vlaneseq
    %v305 = vshrl.u32 %v304, 7
    %v306 = vsub.s32 0, %v305
    %v307 = vrot.slane %v302, %v306
    %v309 = vmul.f32 %v286, %v307
    %v310 = vmul.f32 %v287, %v307
    %v311 = vmul.f32 %v288, %v307
    %v312 = vmul.f32 %v289, %v307
    %v313 = vmul.f32 %v290, %v307
    %v314 = vmul.f32 %v291, %v307
    %v315 = vmul.f32 %v292, %v307
    %v316 = vmul.f32 %v293, %v307
    %v317 = vmul.f32 %v294, %v309
    %v318 = vmul.f32 %v295, %v310
    %v319 = vmul.f32 %v296, %v311
    %v320 = vmul.f32 %v297, %v312
    %v321 = vmul.f32 %v298, %v313
    %v322 = vmul.f32 %v299, %v314
    %v323 = vmul.f32 %v300, %v315
    %v324 = vmul.f32 %v301, %v316
    %v325 = vld [vmem:[%s4] sm:$0x1]
    %v327 = vlaneseq
    %v328 = vshrl.u32 %v327, 7
    %v329 = vsub.s32 0, %v328
    %v330 = vrot.slane %v325, %v329
    %v332 = vadd.f32 %v317, %v330
    %v333 = vadd.f32 %v318, %v330
    %v334 = vadd.f32 %v319, %v330
    %v335 = vadd.f32 %v320, %v330
    %v336 = vadd.f32 %v321, %v330
    %v337 = vadd.f32 %v322, %v330
    %v338 = vadd.f32 %v323, %v330
    %v339 = vadd.f32 %v324, %v330
    %v340 = vmax.f32 %v332, 0.0
    %v341 = vmax.f32 %v333, 0.0
    %v342 = vmax.f32 %v334, 0.0
    %v343 = vmax.f32 %v335, 0.0
    %v344 = vmax.f32 %v336, 0.0
    %v345 = vmax.f32 %v337, 0.0
    %v346 = vmax.f32 %v338, 0.0
    %v347 = vmax.f32 %v339, 0.0
    %v348 = vld [vmem:[%s5] sm:$0xff]
    %v349 = vld [vmem:[%s5 + $0x8] sm:$0xff]
    %v350 = vld [vmem:[%s5 + $0x10] sm:$0xff]
    %v351 = vld [vmem:[%s5 + $0x18] sm:$0xff]
    %v352 = vld [vmem:[%s5 + $0x20] sm:$0xff]
    %v353 = vld [vmem:[%s5 + $0x28] sm:$0xff]
    %v354 = vld [vmem:[%s5 + $0x30] sm:$0xff]
    %v355 = vld [vmem:[%s5 + $0x38] sm:$0xff]
    %v356 = vld [vmem:[%s6] sm:$0x1]
    %v358 = vlaneseq
    %v359 = vshrl.u32 %v358, 7
    %v360 = vsub.s32 0, %v359
    %v361 = vrot.slane %v356, %v360
    %v364 = vsel %vm188, %v340, 0
    %v367 = vsel %vm188, %v341, 0
    %v370 = vsel %vm188, %v342, 0
    %v373 = vsel %vm188, %v343, 0
    %v376 = vsel %vm188, %v344, 0
    %v379 = vsel %vm188, %v345, 0
    %v382 = vsel %vm188, %v346, 0
    %v385 = vsel %vm188, %v347, 0
    %387 = vmatprep.subr.mxu0 0.0
    %388 = vmatpush1.msra.mxu0 0.0
    %389 = vmatprep.subr.mxu0 0.0
    %390 = vmatpush1.msra.mxu0 0.0
    %391 = vmatprep.subr.mxu0 0.0
    %392 = vmatpush1.msra.mxu0 0.0
    %393 = vmatprep.subr.mxu0 0.0
    %394 = vmatpush1.msra.mxu0 0.0
    %395 = vmatprep.subr.mxu0 0.0
    %396 = vmatpush1.msra.mxu0 0.0
    %397 = vmatprep.subr.mxu0 0.0
    %398 = vmatpush1.msra.mxu0 0.0
    %399 = vmatprep.subr.mxu0 0.0
    %400 = vmatpush1.msra.mxu0 0.0
    %401 = vmatprep.subr.mxu0 0.0
    %402 = vmatpush1.msra.mxu0 0.0
    %403 = vmatprep.subr.mxu0 0.0
    %404 = vmatpush1.msra.mxu0 %v355
    %405 = vmatprep.subr.mxu0 0.0
    %406 = vmatpush1.msra.mxu0 %v354
    %407 = vmatprep.subr.mxu0 0.0
    %408 = vmatpush1.msra.mxu0 %v353
    %409 = vmatprep.subr.mxu0 0.0
    %410 = vmatpush1.msra.mxu0 %v352
    %411 = vmatprep.subr.mxu0 0.0
    %412 = vmatpush1.msra.mxu0 %v351
    %413 = vmatprep.subr.mxu0 0.0
    %414 = vmatpush1.msra.mxu0 %v350
    %415 = vmatprep.subr.mxu0 0.0
    %416 = vmatpush1.msra.mxu0 %v349
    %417 = vmatprep.subr.mxu0 0.0
    %418 = vmatpush1.msra.mxu0 %v348
    %419 = vmatprep.subr.mxu0 0.0
    %420 = vmatpush2.msra.mxu0 0.0
    %421 = vmatprep.subr.mxu0 0.0
    %422 = vmatpush2.msra.mxu0 0.0
    %423 = vmatprep.subr.mxu0 0.0
    %424 = vmatpush2.msra.mxu0 0.0
    %425 = vmatprep.subr.mxu0 0.0
    %426 = vmatpush2.msra.mxu0 0.0
    %427 = vmatprep.subr.mxu0 0.0
    %428 = vmatpush2.msra.mxu0 0.0
    %429 = vmatprep.subr.mxu0 0.0
    %430 = vmatpush2.msra.mxu0 0.0
    %431 = vmatprep.subr.mxu0 0.0
    %432 = vmatpush2.msra.mxu0 0.0
    %433 = vmatprep.subr.mxu0 0.0
    %434 = vmatpush2.msra.mxu0 0.0
    %435 = vmatprep.subr.mxu0 0.0
    %436 = vmatpush2.msra.mxu0 0.0
    %437 = vmatprep.subr.mxu0 0.0
    %438 = vmatpush2.msra.mxu0 0.0
    %439 = vmatprep.subr.mxu0 0.0
    %440 = vmatpush2.msra.mxu0 0.0
    %441 = vmatprep.subr.mxu0 0.0
    %442 = vmatpush2.msra.mxu0 0.0
    %443 = vmatprep.subr.mxu0 0.0
    %444 = vmatpush2.msra.mxu0 0.0
    %445 = vmatprep.subr.mxu0 0.0
    %446 = vmatpush2.msra.mxu0 0.0
    %447 = vmatprep.subr.mxu0 0.0
    %448 = vmatpush2.msra.mxu0 0.0
    %449 = vmatprep.subr.mxu0 0.0
    %450 = vmatpush2.msra.mxu0 0.0
    %451 = vmatprep.mubr.f32.mxu0 0.0
    %452 = vmatmul.mubr.f32.gmra.mxu0 %v364
    %v453 = vpop.f32.mrf.mxu0
    %v454 = vadd.f32 %v361, %v453
    %v455 = vpop.f32.mrf.mxu0
    %456 = vmatprep.mubr.f32.mxu0 0.0
    %457 = vmatmul.mubr.f32.gmra.mxu0 %v367
    %v458 = vpop.f32.mrf.mxu0
    %v459 = vadd.f32 %v361, %v458
    %v460 = vpop.f32.mrf.mxu0
    %461 = vmatprep.mubr.f32.mxu0 0.0
    %462 = vmatmul.mubr.f32.gmra.mxu0 %v370
    %v463 = vpop.f32.mrf.mxu0
    %v464 = vadd.f32 %v361, %v463
    %v465 = vpop.f32.mrf.mxu0
    %466 = vmatprep.mubr.f32.mxu0 0.0
    %467 = vmatmul.mubr.f32.gmra.mxu0 %v373
    %v468 = vpop.f32.mrf.mxu0
    %v469 = vadd.f32 %v361, %v468
    %v470 = vpop.f32.mrf.mxu0
    %471 = vmatprep.mubr.f32.mxu0 0.0
    %472 = vmatmul.mubr.f32.gmra.mxu0 %v376
    %v473 = vpop.f32.mrf.mxu0
    %v474 = vadd.f32 %v361, %v473
    %v475 = vpop.f32.mrf.mxu0
    %476 = vmatprep.mubr.f32.mxu0 0.0
    %477 = vmatmul.mubr.f32.gmra.mxu0 %v379
    %v478 = vpop.f32.mrf.mxu0
    %v479 = vadd.f32 %v361, %v478
    %v480 = vpop.f32.mrf.mxu0
    %481 = vmatprep.mubr.f32.mxu0 0.0
    %482 = vmatmul.mubr.f32.gmra.mxu0 %v382
    %v483 = vpop.f32.mrf.mxu0
    %v484 = vadd.f32 %v361, %v483
    %v485 = vpop.f32.mrf.mxu0
    %486 = vmatprep.mubr.f32.mxu0 0.0
    %487 = vmatmul.mubr.f32.gmra.mxu0 %v385
    %v488 = vpop.f32.mrf.mxu0
    %v489 = vadd.f32 %v361, %v488
    %v490 = vpop.f32.mrf.mxu0
    %491 = vdwg.mxu0
    %v492 = vsel %vm58, %v454, 0.0
    %493 = vadd.xlane.f32.xlu0 %v492
    %v494 = vpop.xlane.xlu0 %493
    %v495 = vsel %vm58, %v459, 0.0
    %496 = vadd.xlane.f32.xlu0 %v495
    %v497 = vpop.xlane.xlu0 %496
    %v498 = vsel %vm58, %v464, 0.0
    %499 = vadd.xlane.f32.xlu0 %v498
    %v500 = vpop.xlane.xlu0 %499
    %v501 = vsel %vm58, %v469, 0.0
    %502 = vadd.xlane.f32.xlu0 %v501
    %v503 = vpop.xlane.xlu0 %502
    %v504 = vsel %vm58, %v474, 0.0
    %505 = vadd.xlane.f32.xlu0 %v504
    %v506 = vpop.xlane.xlu0 %505
    %v507 = vsel %vm58, %v479, 0.0
    %508 = vadd.xlane.f32.xlu0 %v507
    %v509 = vpop.xlane.xlu0 %508
    %v510 = vsel %vm58, %v484, 0.0
    %511 = vadd.xlane.f32.xlu0 %v510
    %v512 = vpop.xlane.xlu0 %511
    %v513 = vsel %vm58, %v489, 0.0
    %514 = vadd.xlane.f32.xlu0 %v513
    %v515 = vpop.xlane.xlu0 %514
    %v516 = vrcp.pop 32.0
    %v517 = vmul.f32 %v494, %v516
    %v518 = vmul.f32 %v497, %v516
    %v519 = vmul.f32 %v500, %v516
    %v520 = vmul.f32 %v503, %v516
    %v521 = vmul.f32 %v506, %v516
    %v522 = vmul.f32 %v509, %v516
    %v523 = vmul.f32 %v512, %v516
    %v524 = vmul.f32 %v515, %v516
    %v525 = vmul.f32 %v454, %v454
    %v526 = vmul.f32 %v459, %v459
    %v527 = vmul.f32 %v464, %v464
    %v528 = vmul.f32 %v469, %v469
    %v529 = vmul.f32 %v474, %v474
    %v530 = vmul.f32 %v479, %v479
    %v531 = vmul.f32 %v484, %v484
    %v532 = vmul.f32 %v489, %v489
    %v533 = vsel %vm58, %v525, 0.0
    %534 = vadd.xlane.f32.xlu0 %v533
    %v535 = vpop.xlane.xlu0 %534
    %v536 = vsel %vm58, %v526, 0.0
    %537 = vadd.xlane.f32.xlu0 %v536
    %v538 = vpop.xlane.xlu0 %537
    %v539 = vsel %vm58, %v527, 0.0
    %540 = vadd.xlane.f32.xlu0 %v539
    %v541 = vpop.xlane.xlu0 %540
    %v542 = vsel %vm58, %v528, 0.0
    %543 = vadd.xlane.f32.xlu0 %v542
    %v544 = vpop.xlane.xlu0 %543
    %v545 = vsel %vm58, %v529, 0.0
    %546 = vadd.xlane.f32.xlu0 %v545
    %v547 = vpop.xlane.xlu0 %546
    %v548 = vsel %vm58, %v530, 0.0
    %549 = vadd.xlane.f32.xlu0 %v548
    %v550 = vpop.xlane.xlu0 %549
    %v551 = vsel %vm58, %v531, 0.0
    %552 = vadd.xlane.f32.xlu0 %v551
    %v553 = vpop.xlane.xlu0 %552
    %v554 = vsel %vm58, %v532, 0.0
    %555 = vadd.xlane.f32.xlu0 %v554
    %v556 = vpop.xlane.xlu0 %555
    %v557 = vmul.f32 %v535, %v516
    %v558 = vmul.f32 %v538, %v516
    %v559 = vmul.f32 %v541, %v516
    %v560 = vmul.f32 %v544, %v516
    %v561 = vmul.f32 %v547, %v516
    %v562 = vmul.f32 %v550, %v516
    %v563 = vmul.f32 %v553, %v516
    %v564 = vmul.f32 %v556, %v516
    %v565 = vmul.f32 %v517, %v517
    %v566 = vmul.f32 %v518, %v518
    %v567 = vmul.f32 %v519, %v519
    %v568 = vmul.f32 %v520, %v520
    %v569 = vmul.f32 %v521, %v521
    %v570 = vmul.f32 %v522, %v522
    %v571 = vmul.f32 %v523, %v523
    %v572 = vmul.f32 %v524, %v524
    %v573 = vsub.f32 %v557, %v565
    %v574 = vsub.f32 %v558, %v566
    %v575 = vsub.f32 %v559, %v567
    %v576 = vsub.f32 %v560, %v568
    %v577 = vsub.f32 %v561, %v569
    %v578 = vsub.f32 %v562, %v570
    %v579 = vsub.f32 %v563, %v571
    %v580 = vsub.f32 %v564, %v572
    %v581 = vadd.f32 %v573, 1e-05
    %v582 = vadd.f32 %v574, 1e-05
    %v583 = vadd.f32 %v575, 1e-05
    %v584 = vadd.f32 %v576, 1e-05
    %v585 = vadd.f32 %v577, 1e-05
    %v586 = vadd.f32 %v578, 1e-05
    %v587 = vadd.f32 %v579, 1e-05
    %v588 = vadd.f32 %v580, 1e-05
    %v589 = vrsqrt.pop %v581
    %v590 = vrsqrt.pop %v582
    %v591 = vrsqrt.pop %v583
    %v592 = vrsqrt.pop %v584
    %v593 = vrsqrt.pop %v585
    %v594 = vrsqrt.pop %v586
    %v595 = vrsqrt.pop %v587
    %v596 = vrsqrt.pop %v588
    %v597 = vsub.f32 %v454, %v517
    %v598 = vsub.f32 %v459, %v518
    %v599 = vsub.f32 %v464, %v519
    %v600 = vsub.f32 %v469, %v520
    %v601 = vsub.f32 %v474, %v521
    %v602 = vsub.f32 %v479, %v522
    %v603 = vsub.f32 %v484, %v523
    %v604 = vsub.f32 %v489, %v524
    %v605 = vld [vmem:[%s7] sm:$0x1]
    %v607 = vlaneseq
    %v608 = vshrl.u32 %v607, 7
    %v609 = vsub.s32 0, %v608
    %v610 = vrot.slane %v605, %v609
    %v612 = vmul.f32 %v589, %v610
    %v613 = vmul.f32 %v590, %v610
    %v614 = vmul.f32 %v591, %v610
    %v615 = vmul.f32 %v592, %v610
    %v616 = vmul.f32 %v593, %v610
    %v617 = vmul.f32 %v594, %v610
    %v618 = vmul.f32 %v595, %v610
    %v619 = vmul.f32 %v596, %v610
    %v620 = vmul.f32 %v597, %v612
    %v621 = vmul.f32 %v598, %v613
    %v622 = vmul.f32 %v599, %v614
    %v623 = vmul.f32 %v600, %v615
    %v624 = vmul.f32 %v601, %v616
    %v625 = vmul.f32 %v602, %v617
    %v626 = vmul.f32 %v603, %v618
    %v627 = vmul.f32 %v604, %v619
    %v628 = vld [vmem:[%s8] sm:$0x1]
    %v630 = vlaneseq
    %v631 = vshrl.u32 %v630, 7
    %v632 = vsub.s32 0, %v631
    %v633 = vrot.slane %v628, %v632
    %v635 = vadd.f32 %v620, %v633
    %v636 = vadd.f32 %v621, %v633
    %v637 = vadd.f32 %v622, %v633
    %v638 = vadd.f32 %v623, %v633
    %v639 = vadd.f32 %v624, %v633
    %v640 = vadd.f32 %v625, %v633
    %v641 = vadd.f32 %v626, %v633
    %v642 = vadd.f32 %v627, %v633
    %v643 = vmax.f32 %v635, 0.0
    %v644 = vmax.f32 %v636, 0.0
    %v645 = vmax.f32 %v637, 0.0
    %v646 = vmax.f32 %v638, 0.0
    %v647 = vmax.f32 %v639, 0.0
    %v648 = vmax.f32 %v640, 0.0
    %v649 = vmax.f32 %v641, 0.0
    %v650 = vmax.f32 %v642, 0.0
    %v651 = vld [vmem:[%s9] sm:$0xff]
    %v652 = vld [vmem:[%s9 + $0x8] sm:$0xff]
    %v653 = vld [vmem:[%s9 + $0x10] sm:$0xff]
    %v654 = vld [vmem:[%s9 + $0x18] sm:$0xff]
    %v655 = vld [vmem:[%s10] sm:$0x1]
    %v657 = vlaneseq
    %v658 = vshrl.u32 %v657, 7
    %v659 = vsub.s32 0, %v658
    %v660 = vrot.slane %v655, %v659
    %v663 = vsel %vm58, %v643, 0
    %v666 = vsel %vm58, %v644, 0
    %v669 = vsel %vm58, %v645, 0
    %v672 = vsel %vm58, %v646, 0
    %v675 = vsel %vm58, %v647, 0
    %v678 = vsel %vm58, %v648, 0
    %v681 = vsel %vm58, %v649, 0
    %v684 = vsel %vm58, %v650, 0
    %686 = vmatprep.subr.mxu0 0.0
    %687 = vmatpush1.msra.mxu0 0.0
    %688 = vmatprep.subr.mxu0 0.0
    %689 = vmatpush1.msra.mxu0 0.0
    %690 = vmatprep.subr.mxu0 0.0
    %691 = vmatpush1.msra.mxu0 0.0
    %692 = vmatprep.subr.mxu0 0.0
    %693 = vmatpush1.msra.mxu0 0.0
    %694 = vmatprep.subr.mxu0 0.0
    %695 = vmatpush1.msra.mxu0 0.0
    %696 = vmatprep.subr.mxu0 0.0
    %697 = vmatpush1.msra.mxu0 0.0
    %698 = vmatprep.subr.mxu0 0.0
    %699 = vmatpush1.msra.mxu0 0.0
    %700 = vmatprep.subr.mxu0 0.0
    %701 = vmatpush1.msra.mxu0 0.0
    %702 = vmatprep.subr.mxu0 0.0
    %703 = vmatpush1.msra.mxu0 0.0
    %704 = vmatprep.subr.mxu0 0.0
    %705 = vmatpush1.msra.mxu0 0.0
    %706 = vmatprep.subr.mxu0 0.0
    %707 = vmatpush1.msra.mxu0 0.0
    %708 = vmatprep.subr.mxu0 0.0
    %709 = vmatpush1.msra.mxu0 0.0
    %710 = vmatprep.subr.mxu0 0.0
    %711 = vmatpush1.msra.mxu0 %v654
    %712 = vmatprep.subr.mxu0 0.0
    %713 = vmatpush1.msra.mxu0 %v653
    %714 = vmatprep.subr.mxu0 0.0
    %715 = vmatpush1.msra.mxu0 %v652
    %716 = vmatprep.subr.mxu0 0.0
    %717 = vmatpush1.msra.mxu0 %v651
    %718 = vmatprep.subr.mxu0 0.0
    %719 = vmatpush2.msra.mxu0 0.0
    %720 = vmatprep.subr.mxu0 0.0
    %721 = vmatpush2.msra.mxu0 0.0
    %722 = vmatprep.subr.mxu0 0.0
    %723 = vmatpush2.msra.mxu0 0.0
    %724 = vmatprep.subr.mxu0 0.0
    %725 = vmatpush2.msra.mxu0 0.0
    %726 = vmatprep.subr.mxu0 0.0
    %727 = vmatpush2.msra.mxu0 0.0
    %728 = vmatprep.subr.mxu0 0.0
    %729 = vmatpush2.msra.mxu0 0.0
    %730 = vmatprep.subr.mxu0 0.0
    %731 = vmatpush2.msra.mxu0 0.0
    %732 = vmatprep.subr.mxu0 0.0
    %733 = vmatpush2.msra.mxu0 0.0
    %734 = vmatprep.subr.mxu0 0.0
    %735 = vmatpush2.msra.mxu0 0.0
    %736 = vmatprep.subr.mxu0 0.0
    %737 = vmatpush2.msra.mxu0 0.0
    %738 = vmatprep.subr.mxu0 0.0
    %739 = vmatpush2.msra.mxu0 0.0
    %740 = vmatprep.subr.mxu0 0.0
    %741 = vmatpush2.msra.mxu0 0.0
    %742 = vmatprep.subr.mxu0 0.0
    %743 = vmatpush2.msra.mxu0 0.0
    %744 = vmatprep.subr.mxu0 0.0
    %745 = vmatpush2.msra.mxu0 0.0
    %746 = vmatprep.subr.mxu0 0.0
    %747 = vmatpush2.msra.mxu0 0.0
    %748 = vmatprep.subr.mxu0 0.0
    %749 = vmatpush2.msra.mxu0 0.0
    %750 = vmatprep.mubr.f32.mxu0 0.0
    %751 = vmatmul.mubr.f32.gmra.mxu0 %v663
    %v752 = vpop.f32.mrf.mxu0
    %v753 = vadd.f32 %v660, %v752
    %v754 = vpop.f32.mrf.mxu0
    %755 = vmatprep.mubr.f32.mxu0 0.0
    %756 = vmatmul.mubr.f32.gmra.mxu0 %v666
    %v757 = vpop.f32.mrf.mxu0
    %v758 = vadd.f32 %v660, %v757
    %v759 = vpop.f32.mrf.mxu0
    %760 = vmatprep.mubr.f32.mxu0 0.0
    %761 = vmatmul.mubr.f32.gmra.mxu0 %v669
    %v762 = vpop.f32.mrf.mxu0
    %v763 = vadd.f32 %v660, %v762
    %v764 = vpop.f32.mrf.mxu0
    %765 = vmatprep.mubr.f32.mxu0 0.0
    %766 = vmatmul.mubr.f32.gmra.mxu0 %v672
    %v767 = vpop.f32.mrf.mxu0
    %v768 = vadd.f32 %v660, %v767
    %v769 = vpop.f32.mrf.mxu0
    %770 = vmatprep.mubr.f32.mxu0 0.0
    %771 = vmatmul.mubr.f32.gmra.mxu0 %v675
    %v772 = vpop.f32.mrf.mxu0
    %v773 = vadd.f32 %v660, %v772
    %v774 = vpop.f32.mrf.mxu0
    %775 = vmatprep.mubr.f32.mxu0 0.0
    %776 = vmatmul.mubr.f32.gmra.mxu0 %v678
    %v777 = vpop.f32.mrf.mxu0
    %v778 = vadd.f32 %v660, %v777
    %v779 = vpop.f32.mrf.mxu0
    %780 = vmatprep.mubr.f32.mxu0 0.0
    %781 = vmatmul.mubr.f32.gmra.mxu0 %v681
    %v782 = vpop.f32.mrf.mxu0
    %v783 = vadd.f32 %v660, %v782
    %v784 = vpop.f32.mrf.mxu0
    %785 = vmatprep.mubr.f32.mxu0 0.0
    %786 = vmatmul.mubr.f32.gmra.mxu0 %v684
    %v787 = vpop.f32.mrf.mxu0
    %v788 = vadd.f32 %v660, %v787
    %v789 = vpop.f32.mrf.mxu0
    %790 = vdwg.mxu0
    %791 = vst [vmem:[#allocation2] sm:$0xff] %v753
    %792 = vst [vmem:[#allocation2 + $0x8] sm:$0xff] %v758
    %793 = vst [vmem:[#allocation2 + $0x10] sm:$0xff] %v763
    %794 = vst [vmem:[#allocation2 + $0x18] sm:$0xff] %v768
    %795 = vst [vmem:[#allocation2 + $0x20] sm:$0xff] %v773
    %796 = vst [vmem:[#allocation2 + $0x28] sm:$0xff] %v778
    %797 = vst [vmem:[#allocation2 + $0x30] sm:$0xff] %v783
    %798 = vst [vmem:[#allocation2 + $0x38] sm:$0xff] %v788
    // Predicated region
    $region46: #{tpu_custom_call.1} parent=1 // pred_check
      _
    $region47: #{tpu_custom_call.1} parent=1 // pred_check_branch
      %800 = sbr.rel (0) target = $region49
    $region48: #{tpu_custom_call.1} parent=1 // pred_region
      %s802 = ssub.s32 1024, 1024
      %803 = vsyncadd [#allocation3], %s802
      %s804 = sshll.u32 [#allocation2], 4
      %s805 = int_to_ptr.vmem [resolvable:$true] %s804
      %810 = dma.vmem_to_hbm [thread:$0]  %s805, 1024, %s11, [#allocation3], 128, 128, 8
    $region49: #{tpu_custom_call.1} parent=1 // pred_fallthru
      _
    // Predicated region
    $region50: #{tpu_custom_call.1} parent=1 // pred_check
      _
    $region51: #{tpu_custom_call.1} parent=1 // pred_check_branch
      %812 = sbr.rel (0) target = $region53
    $region52: #{tpu_custom_call.1} parent=1 // pred_region
      %813 = dma.done [#allocation3], 1024
    $region53: #{tpu_custom_call.1} parent=1 // pred_fallthru
      _
    %814 = vsyncpa [#allocation3], 1

</llo_original>
